<compile_context>
chip_gen: v6e
topology: v6e:2x2x1
jax: 0.10.0
libtpu: 0.0.40
codegen_flags: <defaults>
</compile_context>

<pallas_src>
import functools

import jax
import jax.numpy as jnp
import numpy as np
from jax.experimental import pallas as pl
from jax.experimental.pallas import tpu as pltpu


_INV_SQRT2 = 0.7071067811865475244


def _soc_kernel(x_ref, o_ref, *, t, inv_t, inv_t2p1):
    """Fused per-lane cone projection on an interleaved (tb, tf) tile.

    Even lanes hold the first element `a` of each 2-dim group, odd lanes the
    second element `b`.  Everything is computed per-lane; the pair partner is
    obtained from adjacent-lane rotations.
    """
    x = x_ref[...]
    tf = x.shape[-1]  # static tile lane width (multiple of 128 -> pairs intact)

    # partner[i] = x[i+1] on even lanes, x[i-1] on odd lanes.
    prev = pltpu.roll(x, shift=1, axis=1)        # prev[i] = x[i-1]
    nxt = pltpu.roll(x, shift=tf - 1, axis=1)    # nxt[i]  = x[i+1]
    lane = jax.lax.broadcasted_iota(jnp.int32, x.shape, 1)
    partner = jnp.where((lane & 1) == 0, nxt, prev)

    s = (x + partner) * _INV_SQRT2               # s = (a + b) / sqrt(2)
    d = x - partner                              # y (this lane) = d / 2
    y_norm = jnp.abs(d) * _INV_SQRT2             # = |a - b| / sqrt(2)

    mask1 = jnp.logical_and(s * inv_t > -y_norm, s * t < y_norm)
    mask2 = y_norm <= s * t

    s1 = (s + y_norm * t) * inv_t2p1
    # Exact reciprocal keeps 1e-5 parity with the reference; approx=True would
    # move it fully onto the EUP at ~1e-3 relative error on coeff.
    coeff = s1 * t * pl.reciprocal(y_norm + 1e-9)
    x_result = s1 * _INV_SQRT2 + coeff * (0.5 * d)

    # mask1 / mask2 are mutually exclusive (strict vs non-strict comparison),
    # so `mask1 * x_result + mask2 * x` collapses to a nested select.
    o_ref[...] = jnp.where(mask2, x, jnp.where(mask1, x_result, 0.0))


def soc_2dim_with_angle(x, angle, *, block_b=256, block_f=1024):
    """JAX/Pallas equivalent of the PyTorch soc_2dim_with_angle.forward."""
    x = jnp.asarray(x, jnp.float32)
    B, F = x.shape

    # Odd feature count -> implicit trailing zero (as in the PyTorch module).
    # Additionally pad the lane dim up to a multiple of 128 so every block is
    # lane-dense and pairs never straddle a tile boundary.  Zero pairs project
    # to zero, and the padding is sliced off afterwards (no-op for aligned F).
    F2 = F + (F % 2)
    F2p = ((F2 + 127) // 128) * 128
    if F2p != F:
        xp = jnp.pad(x, ((0, 0), (0, F2p - F)))
    else:
        xp = x

    tb = min(B, block_b)   # == B (full dim) or a multiple of 8
    tf = min(F2p, block_f)  # always a multiple of 128 (lane-dense stores)
    grid = (pl.cdiv(B, tb), pl.cdiv(F2p, tf))

    t = float(np.tan(angle)) + 1.19
    kernel = functools.partial(
        _soc_kernel, t=t, inv_t=1.0 / t, inv_t2p1=1.0 / (t * t + 1.0))

    out = pl.pallas_call(
        kernel,
        grid=grid,
        in_specs=[pl.BlockSpec((tb, tf), lambda i, j: (i, j))],
        out_specs=pl.BlockSpec((tb, tf), lambda i, j: (i, j)),
        out_shape=jax.ShapeDtypeStruct((B, F2p), xp.dtype),
        compiler_params=pltpu.CompilerParams(
            dimension_semantics=("parallel", "parallel")),
    )(xp)

    if F2p != F:
        out = out[:, :F]
    return out


def _reference(x, angle):
    """Pure-JAX reference mirroring the PyTorch forward, for sanity check."""
    x = jnp.asarray(x, jnp.float32)
    B, F = x.shape
    if F % 2 == 1:
        x2 = jnp.concatenate([x, jnp.zeros((B, 1), x.dtype)], axis=1)
    else:
        x2 = x
    G = x2.shape[1] // 2
    xr = x2.reshape(B, G, 2)
    s = (1.0 / np.sqrt(2.0)) * jnp.sum(xr, axis=2)
    y = xr - s[..., None] / np.sqrt(2.0)
    t = np.tan(angle) + 1.19
    y_norm = jnp.linalg.norm(y, ord=2, axis=2)
    mask1 = jnp.logical_and(s / t > -y_norm, s * t < y_norm)[..., None]
    mask2 = (y_norm <= s * t)[..., None]
    s1 = (s + y_norm * t) / (t ** 2 + 1)
    coeff = s1 / (y_norm + 1e-9) * t
    x_result = s1[..., None] / np.sqrt(2.0) + coeff[..., None] * y
    out = (mask1 * x_result + mask2 * xr).reshape(B, 2 * G)
    return out[:, :F]


if __name__ == "__main__":
    angle = 0.5  # half-apex angle (rad); angle_tan = tan(0.5)

    key = jax.random.PRNGKey(0)
    k1, k2 = jax.random.split(key)

    # Lane-aligned case (fast path, no padding).
    x1 = jax.random.normal(k1, (8, 256), dtype=jnp.float32)
    out1 = jax.block_until_ready(soc_2dim_with_angle(x1, angle))
    assert out1.shape == x1.shape
    np.testing.assert_allclose(
        np.asarray(out1), np.asarray(_reference(x1, angle)), rtol=1e-5, atol=1e-5)

    # Odd feature count -> exercises the zero-pad + slice path.
    x2 = jax.random.normal(k2, (4, 33), dtype=jnp.float32)
    out2 = jax.block_until_ready(soc_2dim_with_angle(x2, angle))
    assert out2.shape == x2.shape
    np.testing.assert_allclose(
        np.asarray(out2), np.asarray(_reference(x2, angle)), rtol=1e-5, atol=1e-5)

    print("KERNEL_OK")
</pallas_src>

<mosaic_0001>
module attributes {stable_mosaic.version = 11 : i64} {
  func.func @_soc_kernel(%arg0: i32, %arg1: i32, %arg2: memref<8x256xf32, #tpu.memory_space<vmem>>, %arg3: memref<8x256xf32, #tpu.memory_space<vmem>>) attributes {dimension_semantics = [#tpu.dimension_semantics<parallel>, #tpu.dimension_semantics<parallel>], iteration_bounds = array<i64: 1, 1>, scalar_prefetch = 0 : i64, scratch_operands = 0 : i64, tpu.core_type = #tpu.core_type<tc>, window_params = [{transform_indices = @transform_0, window_bounds = array<i64: 8, 256>}, {transform_indices = @transform_1, window_bounds = array<i64: 8, 256>}]} {
    %c0 = arith.constant 0 : index
    %c0_0 = arith.constant 0 : index
    %0 = vector.load %arg2[%c0, %c0_0] : memref<8x256xf32, #tpu.memory_space<vmem>>, vector<8x256xf32>
    %c1_i32 = arith.constant 1 : i32
    %1 = tpu.dynamic_rotate %0 by %c1_i32 dim 1 : vector<8x256xf32>, i32 -> vector<8x256xf32>
    %c255_i32 = arith.constant 255 : i32
    %2 = tpu.dynamic_rotate %0 by %c255_i32 dim 1 : vector<8x256xf32>, i32 -> vector<8x256xf32>
    %3 = tpu.iota {dimensions = array<i32: 1>} : vector<8x256xi32>
    %c1_i32_1 = arith.constant 1 : i32
    %4 = vector.broadcast %c1_i32_1 : i32 to vector<8x256xi32>
    %5 = arith.andi %3, %4 : vector<8x256xi32>
    %c0_i32 = arith.constant 0 : i32
    %6 = vector.broadcast %c0_i32 : i32 to vector<8x256xi32>
    %7 = arith.cmpi eq, %5, %6 : vector<8x256xi32>
    %8 = arith.select %7, %2, %1 : vector<8x256xi1>, vector<8x256xf32>
    %9 = arith.addf %0, %8 : vector<8x256xf32>
    %cst = arith.constant 0.707106769 : f32
    %10 = vector.broadcast %cst : f32 to vector<8x256xf32>
    %11 = arith.mulf %9, %10 : vector<8x256xf32>
    %12 = arith.subf %0, %8 : vector<8x256xf32>
    %13 = math.absf %12 : vector<8x256xf32>
    %cst_2 = arith.constant 0.707106769 : f32
    %14 = vector.broadcast %cst_2 : f32 to vector<8x256xf32>
    %15 = arith.mulf %13, %14 : vector<8x256xf32>
    %cst_3 = arith.constant 0.575936496 : f32
    %16 = vector.broadcast %cst_3 : f32 to vector<8x256xf32>
    %17 = arith.mulf %11, %16 : vector<8x256xf32>
    %cst_4 = arith.constant 0.000000e+00 : f32
    %18 = vector.broadcast %cst_4 : f32 to vector<8x256xf32>
    %19 = arith.subf %18, %15 : vector<8x256xf32>
    %20 = arith.cmpf ogt, %17, %19 : vector<8x256xf32>
    %cst_5 = arith.constant 1.7363025 : f32
    %21 = vector.broadcast %cst_5 : f32 to vector<8x256xf32>
    %22 = arith.mulf %11, %21 : vector<8x256xf32>
    %23 = arith.cmpf olt, %22, %15 : vector<8x256xf32>
    %24 = arith.andi %20, %23 : vector<8x256xi1>
    %cst_6 = arith.constant 1.7363025 : f32
    %25 = vector.broadcast %cst_6 : f32 to vector<8x256xf32>
    %26 = arith.mulf %11, %25 : vector<8x256xf32>
    %27 = arith.cmpf ole, %15, %26 : vector<8x256xf32>
    %cst_7 = arith.constant 1.7363025 : f32
    %28 = vector.broadcast %cst_7 : f32 to vector<8x256xf32>
    %29 = arith.mulf %15, %28 : vector<8x256xf32>
    %30 = arith.addf %11, %29 : vector<8x256xf32>
    %cst_8 = arith.constant 0.249081746 : f32
    %31 = vector.broadcast %cst_8 : f32 to vector<8x256xf32>
    %32 = arith.mulf %30, %31 : vector<8x256xf32>
    %cst_9 = arith.constant 1.7363025 : f32
    %33 = vector.broadcast %cst_9 : f32 to vector<8x256xf32>
    %34 = arith.mulf %32, %33 : vector<8x256xf32>
    %cst_10 = arith.constant 9.99999971E-10 : f32
    %35 = vector.broadcast %cst_10 : f32 to vector<8x256xf32>
    %36 = arith.addf %15, %35 : vector<8x256xf32>
    %37 = tpu.reciprocal %36 : vector<8x256xf32> -> vector<8x256xf32>
    %38 = arith.mulf %34, %37 : vector<8x256xf32>
    %cst_11 = arith.constant 0.707106769 : f32
    %39 = vector.broadcast %cst_11 : f32 to vector<8x256xf32>
    %40 = arith.mulf %32, %39 : vector<8x256xf32>
    %cst_12 = arith.constant 5.000000e-01 : f32
    %41 = vector.broadcast %cst_12 : f32 to vector<8x256xf32>
    %42 = arith.mulf %41, %12 : vector<8x256xf32>
    %43 = arith.mulf %38, %42 : vector<8x256xf32>
    %44 = arith.addf %40, %43 : vector<8x256xf32>
    %cst_13 = arith.constant 0.000000e+00 : f32
    %45 = vector.broadcast %cst_13 : f32 to vector<8x256xf32>
    %46 = arith.select %24, %44, %45 : vector<8x256xi1>, vector<8x256xf32>
    %47 = arith.select %27, %0, %46 : vector<8x256xi1>, vector<8x256xf32>
    %c0_14 = arith.constant 0 : index
    %c0_15 = arith.constant 0 : index
    %48 = vector.load %arg3[%c0_14, %c0_15] : memref<8x256xf32, #tpu.memory_space<vmem>>, vector<8x256xf32>
    tpu.vector_store %arg3[%c0_14, %c0_15], %47 {strides = array<i32>} : memref<8x256xf32, #tpu.memory_space<vmem>>, vector<8x256xf32>,
    return
  }
  func.func @transform_0(%arg0: i32, %arg1: i32) -> (i32, i32) {
    %c0_i32 = arith.constant 0 : i32
    return %arg0, %arg1 : i32, i32
  }
  func.func @transform_1(%arg0: i32, %arg1: i32) -> (i32, i32) {
    %c0_i32 = arith.constant 0 : i32
    return %arg0, %arg1 : i32, i32
  }
}

</mosaic_0001>

<llo_original>
// kernel: tpu_custom_call.1
$region0: #{tpu_custom_call.1}
  #allocation0 [shape = 'u32[]', space=smem, size = 0x4, offset = 0x4, fixed_abs, tag = 'smem constant byte address 0x4 - core index']
  #allocation1 [shape = 'u32[144,128]{1,0:T(1,128)}', space=vmem, size = 0x12000, scoped, tag = 'internal scratch']
  %s0 = inlined_call_operand.hbm [shape: f32[8,256], index: 0, kind: input, shape index: {}]
  %s1 = inlined_call_operand.hbm [shape: f32[8,256], index: 1, kind: output, shape index: {}]
  %s2 = sld [smem:[#allocation0]]
  $region18: #{tpu_custom_call.1} parent=0
    _
  %s4 = ssub.s32 1, %s2
  %s5 = scalar_select 0, %s4, %s2
  $region1: #{tpu_custom_call.1} parent=0
    #allocation2 [shape = 'u8[8192]{0}', space=vmem, size = 0x2000, scoped, tag = 'input window, operand 0, single buffered']
    #allocation3 [shape = 's32[1]{0}', space=sflag, size = 0x4, scoped, tag = 'scoped memory for tpu_custom_call.1']
    #allocation4 [shape = 's32[1]{0}', space=sflag, size = 0x4, scoped, tag = 'scoped memory for tpu_custom_call.1']
    #allocation5 [shape = 'u8[8192]{0}', space=vmem, size = 0x2000, scoped, tag = 'output window, operand 0, single buffered']
    %6 = vsyncpa [#allocation3], 0
    %7 = vsyncpa [#allocation4], 0
    // Predicated region
    $region2: #{tpu_custom_call.1} parent=1 // pred_check
      _
    $region3: #{tpu_custom_call.1} parent=1 // pred_check_branch
      %9 = sbr.rel (0) target = $region5
    $region4: #{tpu_custom_call.1} parent=1 // pred_region
      %s11 = ssub.s32 256, 256
      %12 = vsyncadd [#allocation3], %s11
      %s14 = sshll.u32 [#allocation2], 4
      %s15 = int_to_ptr.vmem [resolvable:$true] %s14
      %17 = dma.hbm_to_vmem [thread:$0]  %s0, 256, %s15, [#allocation3]
    $region5: #{tpu_custom_call.1} parent=1 // pred_fallthru
      _
    // Predicated region
    $region6: #{tpu_custom_call.1} parent=1 // pred_check
      _
    $region7: #{tpu_custom_call.1} parent=1 // pred_check_branch
      %19 = sbr.rel (0) target = $region9
    $region8: #{tpu_custom_call.1} parent=1 // pred_region
      %20 = dma.done [#allocation3], 256
    $region9: #{tpu_custom_call.1} parent=1 // pred_fallthru
      _
    %v21 = vld [vmem:[#allocation2] sm:$0xff]
    %v22 = vld [vmem:[#allocation2 + $0x8] sm:$0xff]
    %23 = vrot.lane.b32.xlu0 %v21, 1
    %v24 = vpop.permute.xlu0 %23
    %25 = vrot.lane.b32.xlu0 %v22, 1
    %v26 = vpop.permute.xlu0 %25
    %v27 = vlaneseq
    %v28 = vand.u32 %v27, 127
    %vm29 = vcmp.lt.s32.totalorder %v28, 1
    %v30 = vsel %vm29, %v24, %v26
    %v31 = vsel %vm29, %v26, %v24
    %32 = vrot.lane.b32.xlu0 %v21, 127
    %v33 = vpop.permute.xlu0 %32
    %34 = vrot.lane.b32.xlu0 %v22, 127
    %v35 = vpop.permute.xlu0 %34
    %vm36 = vcmp.lt.s32.totalorder %v28, 127
    %v37 = vsel %vm36, %v33, %v35
    %v38 = vsel %vm36, %v35, %v33
    %v39 = vadd.s32 %v28, 128
    %v40 = vand.u32 %v28, 1
    %v41 = vand.u32 %v39, 1
    %vm42 = vcmp.eq.s32.totalorder %v40, 0
    %vm43 = vcmp.eq.s32.totalorder %v41, 0
    %v44 = vsel %vm42, %v37, %v31
    %v45 = vsel %vm43, %v38, %v30
    %v46 = vadd.f32 %v21, %v44
    %v47 = vadd.f32 %v22, %v45
    %v48 = vmul.f32 %v46, 0.70710677
    %v49 = vmul.f32 %v47, 0.70710677
    %v50 = vsub.f32 %v21, %v44
    %v51 = vsub.f32 %v22, %v45
    %v52 = vand.u32 2147483647, %v50
    %v53 = vand.u32 2147483647, %v51
    %v54 = vmul.f32 %v52, 0.70710677
    %v55 = vmul.f32 %v53, 0.70710677
    %v56 = vmul.f32 %v48, 0.5759365
    %v57 = vmul.f32 %v49, 0.5759365
    %v58 = vsub.f32 0.0, %v54
    %v59 = vsub.f32 0.0, %v55
    %vm60 = vcmp.gt.f32.partialorder %v56, %v58
    %vm61 = vcmp.gt.f32.partialorder %v57, %v59
    %v62 = vmul.f32 %v48, 1.7363025
    %v63 = vmul.f32 %v49, 1.7363025
    %vm64 = vcmp.lt.f32.partialorder %v62, %v54
    %vm65 = vcmp.lt.f32.partialorder %v63, %v55
    %vm66 = vmand %vm60, %vm64
    %vm67 = vmand %vm61, %vm65
    %vm68 = vcmp.le.f32.partialorder %v54, %v62
    %vm69 = vcmp.le.f32.partialorder %v55, %v63
    %v70 = vmul.f32 %v54, 1.7363025
    %v71 = vmul.f32 %v55, 1.7363025
    %v72 = vadd.f32 %v48, %v70
    %v73 = vadd.f32 %v49, %v71
    %v74 = vmul.f32 %v72, 0.24908175
    %v75 = vmul.f32 %v73, 0.24908175
    %v76 = vmul.f32 %v74, 1.7363025
    %v77 = vmul.f32 %v75, 1.7363025
    %v78 = vadd.f32 %v54, 1e-09
    %v79 = vadd.f32 %v55, 1e-09
    %v80 = vrcp.pop %v78
    %v81 = vrcp.pop %v79
    %v82 = vmul.f32 %v76, %v80
    %v83 = vmul.f32 %v77, %v81
    %v84 = vmul.f32 %v74, 0.70710677
    %v85 = vmul.f32 %v75, 0.70710677
    %v86 = vmul.f32 %v50, 0.5
    %v87 = vmul.f32 %v51, 0.5
    %v88 = vmul.f32 %v82, %v86
    %v89 = vmul.f32 %v83, %v87
    %v90 = vadd.f32 %v84, %v88
    %v91 = vadd.f32 %v85, %v89
    %v92 = vsel %vm66, %v90, 0.0
    %v93 = vsel %vm67, %v91, 0.0
    %v94 = vsel %vm68, %v21, %v92
    %v95 = vsel %vm69, %v22, %v93
    %96 = vst [vmem:[#allocation5] sm:$0xff] %v94
    %97 = vst [vmem:[#allocation5 + $0x8] sm:$0xff] %v95
    // Predicated region
    $region10: #{tpu_custom_call.1} parent=1 // pred_check
      _
    $region11: #{tpu_custom_call.1} parent=1 // pred_check_branch
      %99 = sbr.rel (0) target = $region13
    $region12: #{tpu_custom_call.1} parent=1 // pred_region
      %s101 = ssub.s32 256, 256
      %102 = vsyncadd [#allocation4], %s101
      %s104 = sshll.u32 [#allocation5], 4
      %s105 = int_to_ptr.vmem [resolvable:$true] %s104
      %107 = dma.vmem_to_hbm [thread:$0]  %s105, 256, %s1, [#allocation4]
    $region13: #{tpu_custom_call.1} parent=1 // pred_fallthru
      _
    // Predicated region
    $region14: #{tpu_custom_call.1} parent=1 // pred_check
      _
    $region15: #{tpu_custom_call.1} parent=1 // pred_check_branch
      %109 = sbr.rel (0) target = $region17
    $region16: #{tpu_custom_call.1} parent=1 // pred_region
      %110 = dma.done [#allocation4], 256
    $region17: #{tpu_custom_call.1} parent=1 // pred_fallthru
      _
    %111 = vsyncpa [#allocation3], 1
    %112 = vsyncpa [#allocation4], 1

</llo_original>
